<compile_context>
chip_gen: v5e
topology: v5e:2x2
jax: 0.10.0
libtpu: 0.0.40
codegen_flags: <defaults>
</compile_context>

<pallas_src>
import jax
import jax.numpy as jnp
from jax.experimental import pallas as pl
from jax.experimental.pallas import tpu as pltpu


def mlp_kernel(x_ref, w1_ref, b1_ref, w2_ref, b2_ref, w3_ref, b3_ref, o_ref):
    # x_ref block: (in_f, B_TILE) f32, lane-dense (batch on lanes).
    # w*_ref: PyTorch layout (out, in) in compute dtype.  b*_ref: (out, 1) f32.
    # o_ref block: (out_f, B_TILE) f32, lane-dense.
    cd = w1_ref.dtype

    # Single cast to the MXU compute dtype (no-op when compute dtype is f32).
    xT = x_ref[...].astype(cd)                                  # (in_f, B_TILE)

    # Layer 1: Linear(in_f -> h1) + ReLU   (f32 accumulate, f32 bias/ReLU).
    h1 = jnp.dot(w1_ref[...], xT, preferred_element_type=jnp.float32) + b1_ref[...]
    h1 = jnp.maximum(h1, 0.0)                                   # (h1, B_TILE) f32

    # Layer 2: Linear(h1 -> h2) + ReLU.
    h2 = jnp.dot(w2_ref[...], h1.astype(cd),
                 preferred_element_type=jnp.float32) + b2_ref[...]
    h2 = jnp.maximum(h2, 0.0)                                   # (h2, B_TILE) f32

    # Output layer: Linear(h2 -> out_f), no activation.  Lane-dense store.
    out = jnp.dot(w3_ref[...], h2.astype(cd),
                  preferred_element_type=jnp.float32) + b3_ref[...]
    o_ref[...] = out.astype(o_ref.dtype)                        # (out_f, B_TILE)


def _round_up(v, m):
    return ((v + m - 1) // m) * m


def ann_model_forward(x, params, *, block_b=4096, compute_dtype=jnp.bfloat16):
    """x: (B, input_feature) f32.  params: w1,w2,w3 in (out,in) PyTorch layout,
    b1,b2,b3 as (out,1) f32 columns.  Returns (B, output_features) f32."""
    w1, b1 = params["w1"], params["b1"]
    w2, b2 = params["w2"], params["b2"]
    w3, b3 = params["w3"], params["b3"]

    B, in_f = x.shape
    h1_f, h2_f, out_f = w1.shape[0], w2.shape[0], w3.shape[0]

    # Batch tile: multiple of 128 (lane-dense blocks).  Large by default to
    # amortize per-grid-step overhead; capped so small B still yields >=2 grid
    # blocks (v7x megacore) and tiny B is not massively over-padded.
    block_b = max(128, _round_up(int(block_b), 128))
    target = _round_up(pl.cdiv(B, 2), 128) if B > 128 else 128
    block_b = min(block_b, target)
    n_blocks = pl.cdiv(B, block_b)
    b_pad = n_blocks * block_b

    # Single fused pre-pass over x: transpose to lane-dense (in_f, B) and pad
    # the batch.  No dtype cast here -- the kernel casts under the DMA shadow.
    x_t = jnp.pad(x.T, ((0, 0), (0, b_pad - B)))                 # (in_f, b_pad) f32

    # Tiny weight tensors: one-time cast, then VMEM-resident across the grid.
    w1c = w1.astype(compute_dtype)
    w2c = w2.astype(compute_dtype)
    w3c = w3.astype(compute_dtype)

    const = lambda shape: pl.BlockSpec(shape, lambda i: tuple(0 for _ in shape))

    flops = 2 * b_pad * (in_f * h1_f + h1_f * h2_f + h2_f * out_f)
    bytes_accessed = (
        b_pad * in_f * 4 + b_pad * out_f * 4
        + (w1c.size + w2c.size + w3c.size) * jnp.dtype(compute_dtype).itemsize
        + (b1.size + b2.size + b3.size) * 4
    )

    out_t = pl.pallas_call(
        mlp_kernel,
        out_shape=jax.ShapeDtypeStruct((out_f, b_pad), jnp.float32),
        grid_spec=pltpu.PrefetchScalarGridSpec(
            num_scalar_prefetch=0,
            grid=(n_blocks,),
            in_specs=[
                # x^T: one (in_f, block_b) lane-dense slab per grid step.
                pl.BlockSpec((in_f, block_b), lambda i: (0, i)),
                # Weights/biases: constant block index -> fetched once, resident.
                const(w1c.shape), const(b1.shape),
                const(w2c.shape), const(b2.shape),
                const(w3c.shape), const(b3.shape),
            ],
            # Lane-dense transposed output: (out_f, block_b), batch on lanes.
            out_specs=pl.BlockSpec((out_f, block_b), lambda i: (0, i)),
        ),
        compiler_params=pltpu.CompilerParams(
            dimension_semantics=("parallel",),  # megacore sharding on v7x
        ),
        cost_estimate=pl.CostEstimate(
            flops=flops, transcendentals=0, bytes_accessed=bytes_accessed),
    )(x_t, w1c, b1, w2c, b2, w3c, b3)

    # Un-transpose the tiny (out_f, B) slab and drop batch padding.
    # TODO(synk): fold this final transpose/slice into the consumer when the
    # kernel is embedded in a larger jit.
    return out_t[:, :B].T


def init_params(key, input_feature=8, hidden1=20, hidden2=20, output_features=2):
    """Deterministic init mimicking nn.Linear default (uniform +-1/sqrt(fan_in)).
    Weights in PyTorch (out, in) layout; biases as (out, 1) columns (f32)."""
    ks = jax.random.split(key, 6)

    def linear(kw, kb, fan_in, fan_out):
        bound = 1.0 / jnp.sqrt(jnp.float32(fan_in))
        w = jax.random.uniform(kw, (fan_out, fan_in), jnp.float32, -bound, bound)
        b = jax.random.uniform(kb, (fan_out, 1), jnp.float32, -bound, bound)
        return w, b

    w1, b1 = linear(ks[0], ks[1], input_feature, hidden1)
    w2, b2 = linear(ks[2], ks[3], hidden1, hidden2)
    w3, b3 = linear(ks[4], ks[5], hidden2, output_features)
    return dict(w1=w1, b1=b1, w2=w2, b2=b2, w3=w3, b3=b3)


def reference_forward(x, params):
    h1 = jnp.maximum(x @ params["w1"].T + params["b1"][:, 0], 0.0)
    h2 = jnp.maximum(h1 @ params["w2"].T + params["b2"][:, 0], 0.0)
    return h2 @ params["w3"].T + params["b3"][:, 0]


if __name__ == "__main__":
    key = jax.random.PRNGKey(0)
    k_params, k_x = jax.random.split(key)

    # Non-multiple of 128: exercises padding and the >=2-block (megacore) path.
    B, IN_F = 300, 8
    params = init_params(k_params, input_feature=IN_F, hidden1=20, hidden2=20,
                         output_features=2)
    x = jax.random.normal(k_x, (B, IN_F), jnp.float32)

    ref = reference_forward(x, params)

    # f32 path (matches the reference to matmul-precision tolerance; TPU default
    # dot precision is not bit-exact f32).
    out_f32 = ann_model_forward(x, params, compute_dtype=jnp.float32)
    out_f32 = jax.block_until_ready(out_f32)
    assert out_f32.shape == (B, 2), out_f32.shape
    assert jnp.allclose(out_f32, ref, atol=1e-4, rtol=1e-4), "f32 mismatch vs reference"

    # bf16 path (default; halves x compute-side bytes; rounding compounds over
    # the 3 layers, hence the looser tolerance).
    out_bf16 = ann_model_forward(x, params)
    out_bf16 = jax.block_until_ready(out_bf16)
    assert out_bf16.shape == (B, 2), out_bf16.shape
    assert jnp.allclose(out_bf16, ref, atol=5e-2, rtol=5e-2), "bf16 mismatch vs reference"

    print("KERNEL_OK")
</pallas_src>

<mosaic_0001>
module attributes {stable_mosaic.version = 11 : i64} {
  func.func @mlp_kernel(%arg0: i32, %arg1: memref<8x256xf32, #tpu.memory_space<vmem>>, %arg2: memref<20x8xf32, #tpu.memory_space<vmem>>, %arg3: memref<20x1xf32, #tpu.memory_space<vmem>>, %arg4: memref<20x20xf32, #tpu.memory_space<vmem>>, %arg5: memref<20x1xf32, #tpu.memory_space<vmem>>, %arg6: memref<2x20xf32, #tpu.memory_space<vmem>>, %arg7: memref<2x1xf32, #tpu.memory_space<vmem>>, %arg8: memref<2x256xf32, #tpu.memory_space<vmem>>) attributes {dimension_semantics = [#tpu.dimension_semantics<parallel>], iteration_bounds = array<i64: 2>, scalar_prefetch = 0 : i64, scratch_operands = 0 : i64, tpu.core_type = #tpu.core_type<tc>, window_params = [{transform_indices = @transform_0, window_bounds = array<i64: 8, 256>}, {pipeline_mode = #tpu.pipeline_mode<synchronous>, transform_indices = @transform_1, window_bounds = array<i64: 20, 8>}, {pipeline_mode = #tpu.pipeline_mode<synchronous>, transform_indices = @transform_2, window_bounds = array<i64: 20, 1>}, {pipeline_mode = #tpu.pipeline_mode<synchronous>, transform_indices = @transform_3, window_bounds = array<i64: 20, 20>}, {pipeline_mode = #tpu.pipeline_mode<synchronous>, transform_indices = @transform_4, window_bounds = array<i64: 20, 1>}, {pipeline_mode = #tpu.pipeline_mode<synchronous>, transform_indices = @transform_5, window_bounds = array<i64: 2, 20>}, {pipeline_mode = #tpu.pipeline_mode<synchronous>, transform_indices = @transform_6, window_bounds = array<i64: 2, 1>}, {transform_indices = @transform_7, window_bounds = array<i64: 2, 256>}]} {
    %c0 = arith.constant 0 : index
    %c0_0 = arith.constant 0 : index
    %0 = vector.load %arg1[%c0, %c0_0] : memref<8x256xf32, #tpu.memory_space<vmem>>, vector<8x256xf32>
    %c0_1 = arith.constant 0 : index
    %c0_2 = arith.constant 0 : index
    %1 = vector.load %arg2[%c0_1, %c0_2] : memref<20x8xf32, #tpu.memory_space<vmem>>, vector<20x8xf32>
    %cst = arith.constant dense<0.000000e+00> : vector<20x256xf32>
    %2 = tpu.matmul %1, %0, %cst {dimension_numbers = #tpu.dot_dimension_numbers<[1], [0], [0], [1], [0, 0, 1, 1], [], []>} : vector<20x8xf32>, vector<8x256xf32>, vector<20x256xf32> -> vector<20x256xf32>
    %c0_3 = arith.constant 0 : index
    %c0_4 = arith.constant 0 : index
    %3 = vector.load %arg3[%c0_3, %c0_4] : memref<20x1xf32, #tpu.memory_space<vmem>>, vector<20x1xf32>
    %4 = vector.broadcast %3 : vector<20x1xf32> to vector<20x256xf32>
    %5 = arith.addf %2, %4 : vector<20x256xf32>
    %cst_5 = arith.constant 0.000000e+00 : f32
    %6 = vector.broadcast %cst_5 : f32 to vector<20x256xf32>
    %7 = arith.maximumf %5, %6 : vector<20x256xf32>
    %c0_6 = arith.constant 0 : index
    %c0_7 = arith.constant 0 : index
    %8 = vector.load %arg4[%c0_6, %c0_7] : memref<20x20xf32, #tpu.memory_space<vmem>>, vector<20x20xf32>
    %cst_8 = arith.constant dense<0.000000e+00> : vector<20x256xf32>
    %9 = tpu.matmul %8, %7, %cst_8 {dimension_numbers = #tpu.dot_dimension_numbers<[1], [0], [0], [1], [0, 0, 1, 1], [], []>} : vector<20x20xf32>, vector<20x256xf32>, vector<20x256xf32> -> vector<20x256xf32>
    %c0_9 = arith.constant 0 : index
    %c0_10 = arith.constant 0 : index
    %10 = vector.load %arg5[%c0_9, %c0_10] : memref<20x1xf32, #tpu.memory_space<vmem>>, vector<20x1xf32>
    %11 = vector.broadcast %10 : vector<20x1xf32> to vector<20x256xf32>
    %12 = arith.addf %9, %11 : vector<20x256xf32>
    %cst_11 = arith.constant 0.000000e+00 : f32
    %13 = vector.broadcast %cst_11 : f32 to vector<20x256xf32>
    %14 = arith.maximumf %12, %13 : vector<20x256xf32>
    %c0_12 = arith.constant 0 : index
    %c0_13 = arith.constant 0 : index
    %15 = vector.load %arg6[%c0_12, %c0_13] : memref<2x20xf32, #tpu.memory_space<vmem>>, vector<2x20xf32>
    %cst_14 = arith.constant dense<0.000000e+00> : vector<2x256xf32>
    %16 = tpu.matmul %15, %14, %cst_14 {dimension_numbers = #tpu.dot_dimension_numbers<[1], [0], [0], [1], [0, 0, 1, 1], [], []>} : vector<2x20xf32>, vector<20x256xf32>, vector<2x256xf32> -> vector<2x256xf32>
    %c0_15 = arith.constant 0 : index
    %c0_16 = arith.constant 0 : index
    %17 = vector.load %arg7[%c0_15, %c0_16] : memref<2x1xf32, #tpu.memory_space<vmem>>, vector<2x1xf32>
    %18 = vector.broadcast %17 : vector<2x1xf32> to vector<2x256xf32>
    %19 = arith.addf %16, %18 : vector<2x256xf32>
    %c0_17 = arith.constant 0 : index
    %c0_18 = arith.constant 0 : index
    %20 = vector.load %arg8[%c0_17, %c0_18] : memref<2x256xf32, #tpu.memory_space<vmem>>, vector<2x256xf32>
    tpu.vector_store %arg8[%c0_17, %c0_18], %19 {strides = array<i32>} : memref<2x256xf32, #tpu.memory_space<vmem>>, vector<2x256xf32>,
    return
  }
  func.func @transform_0(%arg0: i32) -> (i32, i32) {
    %c0_i32 = arith.constant 0 : i32
    %c0_i32_0 = arith.constant 0 : i32
    return %c0_i32, %arg0 : i32, i32
  }
  func.func @transform_1(%arg0: i32) -> (i32, i32) {
    %c0_i32 = arith.constant 0 : i32
    %c0_i32_0 = arith.constant 0 : i32
    %c0_i32_1 = arith.constant 0 : i32
    return %c0_i32, %c0_i32_0 : i32, i32
  }
  func.func @transform_2(%arg0: i32) -> (i32, i32) {
    %c0_i32 = arith.constant 0 : i32
    %c0_i32_0 = arith.constant 0 : i32
    %c0_i32_1 = arith.constant 0 : i32
    return %c0_i32, %c0_i32_0 : i32, i32
  }
  func.func @transform_3(%arg0: i32) -> (i32, i32) {
    %c0_i32 = arith.constant 0 : i32
    %c0_i32_0 = arith.constant 0 : i32
    %c0_i32_1 = arith.constant 0 : i32
    return %c0_i32, %c0_i32_0 : i32, i32
  }
  func.func @transform_4(%arg0: i32) -> (i32, i32) {
    %c0_i32 = arith.constant 0 : i32
    %c0_i32_0 = arith.constant 0 : i32
    %c0_i32_1 = arith.constant 0 : i32
    return %c0_i32, %c0_i32_0 : i32, i32
  }
  func.func @transform_5(%arg0: i32) -> (i32, i32) {
    %c0_i32 = arith.constant 0 : i32
    %c0_i32_0 = arith.constant 0 : i32
    %c0_i32_1 = arith.constant 0 : i32
    return %c0_i32, %c0_i32_0 : i32, i32
  }
  func.func @transform_6(%arg0: i32) -> (i32, i32) {
    %c0_i32 = arith.constant 0 : i32
    %c0_i32_0 = arith.constant 0 : i32
    %c0_i32_1 = arith.constant 0 : i32
    return %c0_i32, %c0_i32_0 : i32, i32
  }
  func.func @transform_7(%arg0: i32) -> (i32, i32) {
    %c0_i32 = arith.constant 0 : i32
    %c0_i32_0 = arith.constant 0 : i32
    return %c0_i32, %arg0 : i32, i32
  }
}

</mosaic_0001>

<llo_original>
// kernel: tpu_custom_call.1
$region0: #{tpu_custom_call.1}
  #allocation0 [shape = 'u32[]', space=smem, size = 0x4, offset = 0x4, fixed_abs, tag = 'smem constant byte address 0x4 - core index']
  #allocation1 [shape = 'u32[72,128]{1,0:T(1,128)}', space=vmem, size = 0x9000, scoped, tag = 'internal scratch']
  %s0 = inlined_call_operand.vmem [shape: f32[8,512], index: 0, kind: input, shape index: {}]
  %s1 = inlined_call_operand.vmem [shape: f32[20,8], index: 1, kind: input, shape index: {}]
  %s2 = inlined_call_operand.vmem [shape: f32[20,1], index: 2, kind: input, shape index: {}]
  %s3 = inlined_call_operand.vmem [shape: f32[20,20], index: 3, kind: input, shape index: {}]
  %s4 = inlined_call_operand.vmem [shape: f32[20,1], index: 4, kind: input, shape index: {}]
  %s5 = inlined_call_operand.vmem [shape: f32[2,20], index: 5, kind: input, shape index: {}]
  %s6 = inlined_call_operand.vmem [shape: f32[2,1], index: 6, kind: input, shape index: {}]
  %s7 = inlined_call_operand.hbm [shape: f32[2,512], index: 7, kind: output, shape index: {}]
  %s8 = sld [smem:[#allocation0]]
  $region61: #{tpu_custom_call.1} parent=0
    _
  %s10 = ssub.s32 1, %s8
  %s11 = scalar_select 0, %s10, %s8
  $region1: #{tpu_custom_call.1} parent=0
    #allocation2 [shape = 'u8[4096]{0}', space=vmem, size = 0x1000, scoped, tag = 'output window, operand 0']
    #allocation3 [shape = 's32[2]{0}', space=sflag, size = 0x8, scoped, tag = 'scoped memory for tpu_custom_call.1']
    %12 = vsyncpa [#allocation3], 0
    %s13 = scalar_lea.sflag [#allocation3], 1
    %14 = vsyncpa %s13, 0
    loop: start=0, step=1, limit=4
    $region2: #{tpu_custom_call.1} parent=1 // loop_pre_header
      _
    $region3: #{tpu_custom_call.1} parent=1 // loop_header
      %s16 = sphi 0, %s20
      %p17 = scmp.ge.s32.totalorder %s16, 4
      %s26 = sphi 0, %s28
      %s29 = sphi 0, %s26
      %s30 = sphi 0, %s29
      %s46 = sphi 0, %s30
      %s50 = sphi 0, %s50
      %s52 = sphi 0, %s50
      %s53 = sphi 0, %s52
      %s67 = sphi 0, %s53
      %s71 = sphi 0, %s71
      %s73 = sphi 0, %s71
      %s74 = sphi 0, %s73
      %s88 = sphi 0, %s74
      %s92 = sphi 0, %s92
      %s94 = sphi 0, %s92
      %s95 = sphi 0, %s94
      %s109 = sphi 0, %s95
      %s113 = sphi 0, %s113
      %s115 = sphi 0, %s113
      %s116 = sphi 0, %s115
      %s130 = sphi 0, %s116
      %s134 = sphi 0, %s134
      %s136 = sphi 0, %s134
      %s137 = sphi 0, %s136
      %s151 = sphi 0, %s137
      %s155 = sphi 0, %s155
      %s157 = sphi 0, %s155
      %s158 = sphi 0, %s157
      %s172 = sphi 0, %s158
      %s178 = sphi 0, %s180
      %s181 = sphi 0, %s178
      %s182 = sphi 0, %s181
      %s198 = sphi 0, %s182
    $region4: #{tpu_custom_call.1} parent=1 // loop_header_branch
      %19 = sbr.rel (%p17) target = $region8
    $region5: #{tpu_custom_call.1} parent=1 // loop_body
      %s21 = ssub.s32 %s16, 1
      %s22 = ssub.s32 %s16, 2
      %s23 = sadd.s32 %s16, 1
      %s24 = ssub.s32 %s16, %s23
      %p25 = scmp.eq.s32.totalorder %s24, 0
      %s27 = sadd.s32 %s26, 1
      %s28 = scalar_select %p25, %s26, %s27
      %p31 = pneg %p25
      %p32 = scmp.eq.s32.totalorder %s16, 1
      %p33 = por %p31, %p32
      %p34 = scmp.ne.s32.totalorder %s26, %s29
      %p35 = scmp.eq.s32.totalorder %s16, 0
      %p36 = por %p34, %p35
      %p37 = scmp.ne.s32.totalorder %s26, %s29
      %p38 = scmp.eq.s32.totalorder %s21, 1
      %p39 = por %p37, %p38
      %p40 = scmp.ne.s32.totalorder %s29, %s30
      %p41 = scmp.eq.s32.totalorder %s21, 0
      %p42 = por %p40, %p41
      %p43 = scmp.ne.s32.totalorder %s29, %s30
      %p44 = scmp.eq.s32.totalorder %s22, 1
      %p45 = por %p43, %p44
      %p47 = scmp.ne.s32.totalorder %s30, %s46
      %p48 = scmp.eq.s32.totalorder %s22, 0
      %p49 = por %p47, %p48
      %s51 = sadd.s32 %s50, 1
      %p54 = scmp.eq.s32.totalorder %s16, 1
      %p55 = scmp.ne.s32.totalorder %s50, %s52
      %p56 = scmp.eq.s32.totalorder %s16, 0
      %p57 = por %p55, %p56
      %p58 = scmp.ne.s32.totalorder %s50, %s52
      %p59 = scmp.eq.s32.totalorder %s21, 1
      %p60 = por %p58, %p59
      %p61 = scmp.ne.s32.totalorder %s52, %s53
      %p62 = scmp.eq.s32.totalorder %s21, 0
      %p63 = por %p61, %p62
      %p64 = scmp.ne.s32.totalorder %s52, %s53
      %p65 = scmp.eq.s32.totalorder %s22, 1
      %p66 = por %p64, %p65
      %p68 = scmp.ne.s32.totalorder %s53, %s67
      %p69 = scmp.eq.s32.totalorder %s22, 0
      %p70 = por %p68, %p69
      %s72 = sadd.s32 %s71, 1
      %p75 = scmp.eq.s32.totalorder %s16, 1
      %p76 = scmp.ne.s32.totalorder %s71, %s73
      %p77 = scmp.eq.s32.totalorder %s16, 0
      %p78 = por %p76, %p77
      %p79 = scmp.ne.s32.totalorder %s71, %s73
      %p80 = scmp.eq.s32.totalorder %s21, 1
      %p81 = por %p79, %p80
      %p82 = scmp.ne.s32.totalorder %s73, %s74
      %p83 = scmp.eq.s32.totalorder %s21, 0
      %p84 = por %p82, %p83
      %p85 = scmp.ne.s32.totalorder %s73, %s74
      %p86 = scmp.eq.s32.totalorder %s22, 1
      %p87 = por %p85, %p86
      %p89 = scmp.ne.s32.totalorder %s74, %s88
      %p90 = scmp.eq.s32.totalorder %s22, 0
      %p91 = por %p89, %p90
      %s93 = sadd.s32 %s92, 1
      %p96 = scmp.eq.s32.totalorder %s16, 1
      %p97 = scmp.ne.s32.totalorder %s92, %s94
      %p98 = scmp.eq.s32.totalorder %s16, 0
      %p99 = por %p97, %p98
      %p100 = scmp.ne.s32.totalorder %s92, %s94
      %p101 = scmp.eq.s32.totalorder %s21, 1
      %p102 = por %p100, %p101
      %p103 = scmp.ne.s32.totalorder %s94, %s95
      %p104 = scmp.eq.s32.totalorder %s21, 0
      %p105 = por %p103, %p104
      %p106 = scmp.ne.s32.totalorder %s94, %s95
      %p107 = scmp.eq.s32.totalorder %s22, 1
      %p108 = por %p106, %p107
      %p110 = scmp.ne.s32.totalorder %s95, %s109
      %p111 = scmp.eq.s32.totalorder %s22, 0
      %p112 = por %p110, %p111
      %s114 = sadd.s32 %s113, 1
      %p117 = scmp.eq.s32.totalorder %s16, 1
      %p118 = scmp.ne.s32.totalorder %s113, %s115
      %p119 = scmp.eq.s32.totalorder %s16, 0
      %p120 = por %p118, %p119
      %p121 = scmp.ne.s32.totalorder %s113, %s115
      %p122 = scmp.eq.s32.totalorder %s21, 1
      %p123 = por %p121, %p122
      %p124 = scmp.ne.s32.totalorder %s115, %s116
      %p125 = scmp.eq.s32.totalorder %s21, 0
      %p126 = por %p124, %p125
      %p127 = scmp.ne.s32.totalorder %s115, %s116
      %p128 = scmp.eq.s32.totalorder %s22, 1
      %p129 = por %p127, %p128
      %p131 = scmp.ne.s32.totalorder %s116, %s130
      %p132 = scmp.eq.s32.totalorder %s22, 0
      %p133 = por %p131, %p132
      %s135 = sadd.s32 %s134, 1
      %p138 = scmp.eq.s32.totalorder %s16, 1
      %p139 = scmp.ne.s32.totalorder %s134, %s136
      %p140 = scmp.eq.s32.totalorder %s16, 0
      %p141 = por %p139, %p140
      %p142 = scmp.ne.s32.totalorder %s134, %s136
      %p143 = scmp.eq.s32.totalorder %s21, 1
      %p144 = por %p142, %p143
      %p145 = scmp.ne.s32.totalorder %s136, %s137
      %p146 = scmp.eq.s32.totalorder %s21, 0
      %p147 = por %p145, %p146
      %p148 = scmp.ne.s32.totalorder %s136, %s137
      %p149 = scmp.eq.s32.totalorder %s22, 1
      %p150 = por %p148, %p149
      %p152 = scmp.ne.s32.totalorder %s137, %s151
      %p153 = scmp.eq.s32.totalorder %s22, 0
      %p154 = por %p152, %p153
      %s156 = sadd.s32 %s155, 1
      %p159 = scmp.eq.s32.totalorder %s16, 1
      %p160 = scmp.ne.s32.totalorder %s155, %s157
      %p161 = scmp.eq.s32.totalorder %s16, 0
      %p162 = por %p160, %p161
      %p163 = scmp.ne.s32.totalorder %s155, %s157
      %p164 = scmp.eq.s32.totalorder %s21, 1
      %p165 = por %p163, %p164
      %p166 = scmp.ne.s32.totalorder %s157, %s158
      %p167 = scmp.eq.s32.totalorder %s21, 0
      %p168 = por %p166, %p167
      %p169 = scmp.ne.s32.totalorder %s157, %s158
      %p170 = scmp.eq.s32.totalorder %s22, 1
      %p171 = por %p169, %p170
      %p173 = scmp.ne.s32.totalorder %s158, %s172
      %p174 = scmp.eq.s32.totalorder %s22, 0
      %p175 = por %p173, %p174
      %s176 = ssub.s32 %s16, %s23
      %p177 = scmp.eq.s32.totalorder %s176, 0
      %s179 = sadd.s32 %s178, 1
      %s180 = scalar_select %p177, %s178, %s179
      %p183 = pneg %p177
      %p184 = scmp.eq.s32.totalorder %s16, 1
      %p185 = por %p183, %p184
      %p186 = scmp.ne.s32.totalorder %s178, %s181
      %p187 = scmp.eq.s32.totalorder %s16, 0
      %p188 = por %p186, %p187
      %p189 = scmp.ne.s32.totalorder %s178, %s181
      %p190 = scmp.eq.s32.totalorder %s21, 1
      %p191 = por %p189, %p190
      %p192 = scmp.ne.s32.totalorder %s181, %s182
      %p193 = scmp.eq.s32.totalorder %s21, 0
      %p194 = por %p192, %p193
      %p195 = scmp.ne.s32.totalorder %s181, %s182
      %p196 = scmp.eq.s32.totalorder %s22, 1
      %p197 = por %p195, %p196
      %p199 = scmp.ne.s32.totalorder %s182, %s198
      %p200 = scmp.eq.s32.totalorder %s22, 0
      %p201 = por %p199, %p200
      %p202 = scmp.le.s32.totalorder 1, %s16
      %p203 = scmp.lt.s32.totalorder %s16, 3
      %p204 = pnand %p202, %p203
      %p205 = pneg %p204
      // Predicated region
      $region9: #{tpu_custom_call.1} parent=5 // pred_check
        _
      $region10: #{tpu_custom_call.1} parent=5 // pred_check_branch
        %207 = sbr.rel (%p204) target = $region12
      $region11: #{tpu_custom_call.1} parent=5 // pred_region
        %s208 = ssub.s32 %s16, 1
        // Predicated region
        $region13: #{tpu_custom_call.1} parent=11 // pred_check
          %p209 = pneg %p63
        $region14: #{tpu_custom_call.1} parent=11 // pred_check_branch
          %211 = sbr.rel (%p209) target = $region16
        $region15: #{tpu_custom_call.1} parent=11 // pred_region
          _
        $region16: #{tpu_custom_call.1} parent=11 // pred_fallthru
          _
        // Predicated region
        $region17: #{tpu_custom_call.1} parent=11 // pred_check
          %p212 = pneg %p84
        $region18: #{tpu_custom_call.1} parent=11 // pred_check_branch
          %214 = sbr.rel (%p212) target = $region20
        $region19: #{tpu_custom_call.1} parent=11 // pred_region
          _
        $region20: #{tpu_custom_call.1} parent=11 // pred_fallthru
          _
        // Predicated region
        $region21: #{tpu_custom_call.1} parent=11 // pred_check
          %p215 = pneg %p105
        $region22: #{tpu_custom_call.1} parent=11 // pred_check_branch
          %217 = sbr.rel (%p215) target = $region24
        $region23: #{tpu_custom_call.1} parent=11 // pred_region
          _
        $region24: #{tpu_custom_call.1} parent=11 // pred_fallthru
          _
        // Predicated region
        $region25: #{tpu_custom_call.1} parent=11 // pred_check
          %p218 = pneg %p126
        $region26: #{tpu_custom_call.1} parent=11 // pred_check_branch
          %220 = sbr.rel (%p218) target = $region28
        $region27: #{tpu_custom_call.1} parent=11 // pred_region
          _
        $region28: #{tpu_custom_call.1} parent=11 // pred_fallthru
          _
        // Predicated region
        $region29: #{tpu_custom_call.1} parent=11 // pred_check
          %p221 = pneg %p147
        $region30: #{tpu_custom_call.1} parent=11 // pred_check_branch
          %223 = sbr.rel (%p221) target = $region32
        $region31: #{tpu_custom_call.1} parent=11 // pred_region
          _
        $region32: #{tpu_custom_call.1} parent=11 // pred_fallthru
          _
        // Predicated region
        $region33: #{tpu_custom_call.1} parent=11 // pred_check
          %p224 = pneg %p168
        $region34: #{tpu_custom_call.1} parent=11 // pred_check_branch
          %226 = sbr.rel (%p224) target = $region36
        $region35: #{tpu_custom_call.1} parent=11 // pred_region
          _
        $region36: #{tpu_custom_call.1} parent=11 // pred_fallthru
          _
      $region12: #{tpu_custom_call.1} parent=5 // pred_fallthru
        _
      %p227 = scmp.lt.s32.totalorder %s16, 2
      // Predicated region
      $region37: #{tpu_custom_call.1} parent=5 // pred_check
        %p228 = pneg %p227
      $region38: #{tpu_custom_call.1} parent=5 // pred_check_branch
        %230 = sbr.rel (%p228) target = $region40
      $region39: #{tpu_custom_call.1} parent=5 // pred_region
        // Predicated region
        $region41: #{tpu_custom_call.1} parent=39 // pred_check
          %p231 = pneg %p36
        $region42: #{tpu_custom_call.1} parent=39 // pred_check_branch
          %233 = sbr.rel (%p231) target = $region44
        $region43: #{tpu_custom_call.1} parent=39 // pred_region
          %s234 = smul.u32 2, %s16
          %p235 = scmp.lt.s32.totalorder %s234, 3
          %s236 = scalar_select %p235, %s234, 3
          %s237 = smul.addr %s236, 8
          %s238 = scalar_lea.vmem %s0, %s237
          %s239 = smul.u32 2, %s16
        $region44: #{tpu_custom_call.1} parent=39 // pred_fallthru
          _
      $region40: #{tpu_custom_call.1} parent=5 // pred_fallthru
        _
      %p240 = scmp.le.s32.totalorder 1, %s16
      %p241 = scmp.lt.s32.totalorder %s16, 3
      %p242 = pnand %p240, %p241
      %p243 = pneg %p242
      // Predicated region
      $region45: #{tpu_custom_call.1} parent=5 // pred_check
        _
      $region46: #{tpu_custom_call.1} parent=5 // pred_check_branch
        %245 = sbr.rel (%p242) target = $region48
      $region47: #{tpu_custom_call.1} parent=5 // pred_region
        %s246 = ssub.s32 %s16, 1
        %s247 = smul.u32 2, %s21
        %p248 = scmp.lt.s32.totalorder %s247, 3
        %s249 = scalar_select %p248, %s247, 3
        %s250 = smul.addr %s249, 8
        %s251 = scalar_lea.vmem %s0, %s250
        %p252 = pneg %p42
        %p253 = pneg %p39
        %p254 = pneg %p63
        %p255 = pneg %p60
        %p256 = pneg %p84
        %p257 = pneg %p81
        %p258 = pneg %p105
        %p259 = pneg %p102
        %p260 = pneg %p126
        %p261 = pneg %p123
        %p262 = pneg %p147
        %p263 = pneg %p144
        %p264 = pneg %p168
        %p265 = pneg %p165
        %p266 = pneg %p194
        %p267 = pneg %p191
        %s268 = sand.u32 %s181, 1
        %s269 = scalar_lea.sflag [#allocation3], %s268
        %s270 = sand.u32 %s181, 1
        %s271 = smul.addr %s270, 4
        %s272 = scalar_lea.vmem [#allocation2], %s271
        %s273 = smul.u32 2, %s21
        %p274 = scmp.lt.s32.totalorder %s273, 3
        %s275 = scalar_select %p274, %s273, 3
        %s276 = smul.addr %s275, 8
        %s277 = scalar_lea.vmem %s0, %s276
        %s278 = smul.u32 2, %s21
        %s279 = smul.u32 2, %s21
        %v280 = vld [vmem:[%s277] sm:$0xff]
        %v281 = vld [vmem:[%s277 + $0x8] sm:$0xff]
        %v282 = vld [vmem:[%s1] sm:$0xff]
        %v283 = vld [vmem:[%s1 + $0x8] sm:$0xff]
        %v284 = vld [vmem:[%s1 + $0x10] sm:$0xf]
        %v285 = vld [vmem:[%s2] sm:$0xff]
        %v286 = vld [vmem:[%s2 + $0x8] sm:$0xff]
        %v287 = vld [vmem:[%s2 + $0x10] sm:$0xf]
        %289 = vset.pattern.permute.xlu0 0
        %290 = vperm.xlu0 %289, %v285
        %v291 = vpop.permute.xlu0 %290
        %294 = vset.pattern.permute.xlu0 0
        %295 = vperm.xlu0 %294, %v286
        %v296 = vpop.permute.xlu0 %295
        %299 = vset.pattern.permute.xlu0 0
        %300 = vperm.xlu0 %299, %v287
        %v301 = vpop.permute.xlu0 %300
        %vm303 = vcmask 64512
        %v305 = vsel %vm303, %v282, 0
        %v308 = vsel %vm303, %v283, 0
        %v311 = vsel %vm303, %v284, 0
        %313 = vmatpush.msra.mxu0 0.0
        %314 = vmatpush.msra.mxu0 0.0
        %315 = vmatpush.msra.mxu0 0.0
        %316 = vmatpush.msra.mxu0 0.0
        %317 = vmatpush.msra.mxu0 0.0
        %318 = vmatpush.msra.mxu0 0.0
        %319 = vmatpush.msra.mxu0 0.0
        %320 = vmatpush.msra.mxu0 0.0
        %321 = vmatpush.msra.mxu0 0.0
        %322 = vmatpush.msra.mxu0 0.0
        %323 = vmatpush.msra.mxu0 0.0
        %324 = vmatpush.msra.mxu0 0.0
        %325 = vmatpush.msra.mxu0 0.0
        %326 = vmatpush.msra.mxu0 0.0
        %327 = vmatpush.msra.mxu0 0.0
        %328 = vmatpush.msra.mxu0 %v280
        %329 = vmatmul.f32.gmra.mxu0 %v305
        %v330 = vpop.f32.mrf.mxu0
        %v331 = vadd.f32 %v291, %v330
        %332 = vmatmul.f32.gmra.mxu0 %v308
        %v333 = vpop.f32.mrf.mxu0
        %v334 = vadd.f32 %v296, %v333
        %335 = vmatmul.f32.gmra.mxu0 %v311
        %v336 = vpop.f32.mrf.mxu0
        %v337 = vadd.f32 %v301, %v336
        %338 = vdwg.mxu0
        %339 = vmatpush.msra.mxu0 0.0
        %340 = vmatpush.msra.mxu0 0.0
        %341 = vmatpush.msra.mxu0 0.0
        %342 = vmatpush.msra.mxu0 0.0
        %343 = vmatpush.msra.mxu0 0.0
        %344 = vmatpush.msra.mxu0 0.0
        %345 = vmatpush.msra.mxu0 0.0
        %346 = vmatpush.msra.mxu0 0.0
        %347 = vmatpush.msra.mxu0 0.0
        %348 = vmatpush.msra.mxu0 0.0
        %349 = vmatpush.msra.mxu0 0.0
        %350 = vmatpush.msra.mxu0 0.0
        %351 = vmatpush.msra.mxu0 0.0
        %352 = vmatpush.msra.mxu0 0.0
        %353 = vmatpush.msra.mxu0 0.0
        %354 = vmatpush.msra.mxu0 %v281
        %355 = vmatmul.f32.gmra.mxu0 %v305
        %v356 = vpop.f32.mrf.mxu0
        %v357 = vadd.f32 %v291, %v356
        %358 = vmatmul.f32.gmra.mxu0 %v308
        %v359 = vpop.f32.mrf.mxu0
        %v360 = vadd.f32 %v296, %v359
        %361 = vmatmul.f32.gmra.mxu0 %v311
        %v362 = vpop.f32.mrf.mxu0
        %v363 = vadd.f32 %v301, %v362
        %364 = vdwg.mxu0
        %v365 = vmax.f32 %v331, 0.0
        %v366 = vmax.f32 %v357, 0.0
        %v367 = vmax.f32 %v334, 0.0
        %v368 = vmax.f32 %v360, 0.0
        %v369 = vmax.f32 %v337, 0.0
        %v370 = vmax.f32 %v363, 0.0
        %v371 = vld [vmem:[%s3] sm:$0xff]
        %v372 = vld [vmem:[%s3 + $0x8] sm:$0xff]
        %v373 = vld [vmem:[%s3 + $0x10] sm:$0xf]
        %v374 = vld [vmem:[%s4] sm:$0xff]
        %v375 = vld [vmem:[%s4 + $0x8] sm:$0xff]
        %v376 = vld [vmem:[%s4 + $0x10] sm:$0xf]
        %378 = vset.pattern.permute.xlu0 0
        %379 = vperm.xlu0 %378, %v374
        %v380 = vpop.permute.xlu0 %379
        %383 = vset.pattern.permute.xlu0 0
        %384 = vperm.xlu0 %383, %v375
        %v385 = vpop.permute.xlu0 %384
        %388 = vset.pattern.permute.xlu0 0
        %389 = vperm.xlu0 %388, %v376
        %v390 = vpop.permute.xlu0 %389
        %vm392 = vcmask 162816
        %v394 = vsel %vm392, %v371, 0
        %v397 = vsel %vm392, %v372, 0
        %v400 = vsel %vm392, %v373, 0
        %vm402 = vcmask 1043456
        %v404 = vsel %vm402, %v369, 0
        %v407 = vsel %vm402, %v370, 0
        %409 = vmatpush.msra.mxu0 0.0
        %410 = vmatpush.msra.mxu0 0.0
        %411 = vmatpush.msra.mxu0 0.0
        %412 = vmatpush.msra.mxu0 0.0
        %413 = vmatpush.msra.mxu0 0.0
        %414 = vmatpush.msra.mxu0 0.0
        %415 = vmatpush.msra.mxu0 0.0
        %416 = vmatpush.msra.mxu0 0.0
        %417 = vmatpush.msra.mxu0 0.0
        %418 = vmatpush.msra.mxu0 0.0
        %419 = vmatpush.msra.mxu0 0.0
        %420 = vmatpush.msra.mxu0 0.0
        %421 = vmatpush.msra.mxu0 0.0
        %422 = vmatpush.msra.mxu0 %v404
        %423 = vmatpush.msra.mxu0 %v367
        %424 = vmatpush.msra.mxu0 %v365
        %425 = vmatmul.f32.gmra.mxu0 %v394
        %v426 = vpop.f32.mrf.mxu0
        %v427 = vadd.f32 %v380, %v426
        %428 = vmatmul.f32.gmra.mxu0 %v397
        %v429 = vpop.f32.mrf.mxu0
        %v430 = vadd.f32 %v385, %v429
        %431 = vmatmul.f32.gmra.mxu0 %v400
        %v432 = vpop.f32.mrf.mxu0
        %v433 = vadd.f32 %v390, %v432
        %434 = vdwg.mxu0
        %435 = vmatpush.msra.mxu0 0.0
        %436 = vmatpush.msra.mxu0 0.0
        %437 = vmatpush.msra.mxu0 0.0
        %438 = vmatpush.msra.mxu0 0.0
        %439 = vmatpush.msra.mxu0 0.0
        %440 = vmatpush.msra.mxu0 0.0
        %441 = vmatpush.msra.mxu0 0.0
        %442 = vmatpush.msra.mxu0 0.0
        %443 = vmatpush.msra.mxu0 0.0
        %444 = vmatpush.msra.mxu0 0.0
        %445 = vmatpush.msra.mxu0 0.0
        %446 = vmatpush.msra.mxu0 0.0
        %447 = vmatpush.msra.mxu0 0.0
        %448 = vmatpush.msra.mxu0 %v407
        %449 = vmatpush.msra.mxu0 %v368
        %450 = vmatpush.msra.mxu0 %v366
        %451 = vmatmul.f32.gmra.mxu0 %v394
        %v452 = vpop.f32.mrf.mxu0
        %v453 = vadd.f32 %v380, %v452
        %454 = vmatmul.f32.gmra.mxu0 %v397
        %v455 = vpop.f32.mrf.mxu0
        %v456 = vadd.f32 %v385, %v455
        %457 = vmatmul.f32.gmra.mxu0 %v400
        %v458 = vpop.f32.mrf.mxu0
        %v459 = vadd.f32 %v390, %v458
        %460 = vdwg.mxu0
        %v461 = vmax.f32 %v427, 0.0
        %v462 = vmax.f32 %v453, 0.0
        %v463 = vmax.f32 %v430, 0.0
        %v464 = vmax.f32 %v456, 0.0
        %v465 = vmax.f32 %v433, 0.0
        %v466 = vmax.f32 %v459, 0.0
        %v467 = vld [vmem:[%s5] sm:$0x3]
        %v468 = vld [vmem:[%s6] sm:$0x3]
        %470 = vset.pattern.permute.xlu0 0
        %471 = vperm.xlu0 %470, %v468
        %v472 = vpop.permute.xlu0 %471
        %v475 = vsel %vm392, %v467, 0
        %v478 = vsel %vm402, %v465, 0
        %v481 = vsel %vm402, %v466, 0
        %483 = vmatpush.msra.mxu0 0.0
        %484 = vmatpush.msra.mxu0 0.0
        %485 = vmatpush.msra.mxu0 0.0
        %486 = vmatpush.msra.mxu0 0.0
        %487 = vmatpush.msra.mxu0 0.0
        %488 = vmatpush.msra.mxu0 0.0
        %489 = vmatpush.msra.mxu0 0.0
        %490 = vmatpush.msra.mxu0 0.0
        %491 = vmatpush.msra.mxu0 0.0
        %492 = vmatpush.msra.mxu0 0.0
        %493 = vmatpush.msra.mxu0 0.0
        %494 = vmatpush.msra.mxu0 0.0
        %495 = vmatpush.msra.mxu0 0.0
        %496 = vmatpush.msra.mxu0 %v478
        %497 = vmatpush.msra.mxu0 %v463
        %498 = vmatpush.msra.mxu0 %v461
        %499 = vmatmul.f32.gmra.mxu0 %v475
        %v500 = vpop.f32.mrf.mxu0
        %v501 = vadd.f32 %v472, %v500
        %502 = vdwg.mxu0
        %503 = vmatpush.msra.mxu0 0.0
        %504 = vmatpush.msra.mxu0 0.0
        %505 = vmatpush.msra.mxu0 0.0
        %506 = vmatpush.msra.mxu0 0.0
        %507 = vmatpush.msra.mxu0 0.0
        %508 = vmatpush.msra.mxu0 0.0
        %509 = vmatpush.msra.mxu0 0.0
        %510 = vmatpush.msra.mxu0 0.0
        %511 = vmatpush.msra.mxu0 0.0
        %512 = vmatpush.msra.mxu0 0.0
        %513 = vmatpush.msra.mxu0 0.0
        %514 = vmatpush.msra.mxu0 0.0
        %515 = vmatpush.msra.mxu0 0.0
        %516 = vmatpush.msra.mxu0 %v481
        %517 = vmatpush.msra.mxu0 %v464
        %518 = vmatpush.msra.mxu0 %v462
        %519 = vmatmul.f32.gmra.mxu0 %v475
        %v520 = vpop.f32.mrf.mxu0
        %v521 = vadd.f32 %v472, %v520
        %522 = vdwg.mxu0
        %v525 = vrot.slane %v521, 6
        %vm526 = vcmask 1041408
        %v527 = vsel %vm526, %v501, %v525
        %529 = vst [vmem:[%s272] sm:$0xf] %v527
        %s530 = sand.u32 %s181, 1
        %s531 = scalar_lea.sflag [#allocation3], %s530
        %s532 = sand.u32 %s181, 1
        %s533 = smul.addr %s532, 4
        %s534 = scalar_lea.vmem [#allocation2], %s533
        // Predicated region
        $region49: #{tpu_custom_call.1} parent=47 // pred_check
          %p535 = pneg %p191
        $region50: #{tpu_custom_call.1} parent=47 // pred_check_branch
          %537 = sbr.rel (%p535) target = $region52
        $region51: #{tpu_custom_call.1} parent=47 // pred_region
          %s538 = smul.u32 2, %s21
          %540 = vsyncadd %s531, 0
          %s541 = smul.addr %s538, 2
          %s542 = scalar_lea.hbm %s7, %s541
          %s544 = sshll.u32 %s534, 4
          %s545 = int_to_ptr.vmem [resolvable:$true] %s544
          %s546 = sshll.u32 %s542, 4
          %s547 = int_to_ptr.hbm [resolvable:$true] %s546
          %549 = dma.vmem_to_hbm [thread:$0]  %s545, 64, %s547, %s531
        $region52: #{tpu_custom_call.1} parent=47 // pred_fallthru
          _
      $region48: #{tpu_custom_call.1} parent=5 // pred_fallthru
        _
      %p550 = scmp.le.s32.totalorder 2, %s16
      // Predicated region
      $region53: #{tpu_custom_call.1} parent=5 // pred_check
        %p551 = pneg %p550
      $region54: #{tpu_custom_call.1} parent=5 // pred_check_branch
        %553 = sbr.rel (%p551) target = $region56
      $region55: #{tpu_custom_call.1} parent=5 // pred_region
        %s554 = ssub.s32 %s16, 2
        // Predicated region
        $region57: #{tpu_custom_call.1} parent=55 // pred_check
          %p555 = pneg %p197
        $region58: #{tpu_custom_call.1} parent=55 // pred_check_branch
          %557 = sbr.rel (%p555) target = $region60
        $region59: #{tpu_custom_call.1} parent=55 // pred_region
          %s558 = sand.u32 %s182, 1
          %s559 = scalar_lea.sflag [#allocation3], %s558
          %s560 = sand.u32 %s182, 1
          %s561 = smul.addr %s560, 4
          %s562 = scalar_lea.vmem [#allocation2], %s561
          %564 = dma.done %s559, 64
        $region60: #{tpu_custom_call.1} parent=55 // pred_fallthru
          _
      $region56: #{tpu_custom_call.1} parent=5 // pred_fallthru
        _
    $region6: #{tpu_custom_call.1} parent=1 // loop_footer
      %s20 = sadd.s32 1, %s16
    $region7: #{tpu_custom_call.1} parent=1 // loop_footer_branch
      %15 = sbr.rel target = $region3
    $region8: #{tpu_custom_call.1} parent=1 // loop_exit
      _
    %565 = vsyncpa [#allocation3], 1
    %s566 = scalar_lea.sflag [#allocation3], 1
    %567 = vsyncpa %s566, 1

</llo_original>
